<compile_context>
chip_gen: v7x
topology: tpu7x:2x2x1
jax: 0.10.0
libtpu: 0.0.40
codegen_flags: <defaults>
</compile_context>

<pallas_src>
import functools

import jax
import jax.numpy as jnp
from jax.experimental import pallas as pl
from jax.experimental.pallas import tpu as pltpu


def _cdiv(a, b):
    return -(-a // b)


def _round_up(x, m):
    return _cdiv(x, m) * m


def _focal_loss_kernel(preds_ref, targets_ref, out_ref, acc_ref, *,
                       alpha, gamma, n_valid, tile_n, num_tiles):
    i = pl.program_id(0)

    @pl.when(i == 0)
    def _init():
        acc_ref[...] = jnp.zeros_like(acc_ref)

    # (TILE_N, C) natural-layout block -> f32 -> lane-dense (C, TILE_N): samples ride
    # the 128-wide lane axis, classes ride sublanes (C << 128 would waste ~7/8 of every
    # vreg in the untransposed orientation).
    x = jnp.transpose(preds_ref[...].astype(jnp.float32))    # (C, TILE_N)
    t = targets_ref[...]                                      # (1, TILE_N) int32

    # Numerically stable log-sum-exp pieces, reduced over the class (sublane) axis.
    m = jnp.max(x, axis=0, keepdims=True)                     # (1, TILE_N)
    shifted = x - m                                           # (C, TILE_N)
    ex = jnp.exp(shifted)                                     # (C, TILE_N)

    rows = jax.lax.broadcasted_iota(jnp.int32, x.shape, 0)    # class index per row
    sel = rows == t                                           # one-hot target mask
    # NOTE: out-of-range targets (t < 0 or t >= C) select nothing -> ce = lse; the
    # PyTorch reference would error/clamp instead.  Valid inputs are unaffected.
    shifted_t = jnp.sum(jnp.where(sel, shifted, 0.0), axis=0, keepdims=True)
    non_target = jnp.sum(jnp.where(sel, 0.0, ex), axis=0, keepdims=True)
    ex_t = jnp.exp(shifted_t)                                 # (1, TILE_N), cheap
    sum_ex = non_target + ex_t                                # saves a full-tile reduce
    ce = jnp.log(sum_ex) - shifted_t                          # cross entropy
    one_minus_pt = non_target / sum_ex                        # no cancellation at pt~1

    # (1 - pt)^gamma: integer-gamma fast path avoids float pow (exp+log on the EUP).
    if float(gamma) == int(gamma) and gamma >= 0:
        w = jnp.ones_like(one_minus_pt)
        for _ in range(int(gamma)):
            w = w * one_minus_pt
    else:
        w = one_minus_pt ** gamma
    focal = (alpha * w) * ce                                  # (1, TILE_N)

    if n_valid % tile_n == 0:
        acc_ref[...] += focal        # no ragged tail: never emit the mask
    else:
        @pl.when(i < num_tiles - 1)
        def _acc_full():
            acc_ref[...] += focal

        @pl.when(i == num_tiles - 1)
        def _acc_tail():
            # Only the last tile can contain out-of-bounds (garbage) columns.
            col = i * tile_n + jax.lax.broadcasted_iota(jnp.int32, focal.shape, 1)
            acc_ref[...] += jnp.where(col < n_valid, focal, 0.0)

    @pl.when(i == num_tiles - 1)
    def _finalize():
        total = jnp.sum(acc_ref[...])                         # single cross-lane reduce
        out_ref[...] = jnp.broadcast_to(total, out_ref.shape).astype(out_ref.dtype)


def focal_loss(preds, targets, *, alpha=0.5, gamma=2.0, max_block_bytes=512 * 1024):
    """Mean-reduced focal loss: mean(alpha * (1 - pt)^gamma * cross_entropy(preds, t)).

    preds: (N, C) logits (any float dtype, read in natural layout);
    targets: (N,) integer class indices.
    Only the module's default reduction='mean' is implemented.
    """
    n, c = preds.shape
    itemsize = jnp.dtype(preds.dtype).itemsize

    # Batch tile: multiple of 128 (samples sit on the lane axis in-kernel), preds block
    # capped at ~max_block_bytes (>=85% of HBM roofline is reached well below 1 MiB,
    # and small blocks keep VMEM / vreg-spill pressure low, esp. on v7x's 64 MiB VMEM).
    tile_n = (max_block_bytes // max(1, c * itemsize)) // 128 * 128
    tile_n = max(128, tile_n)
    tile_n = min(tile_n, _round_up(n, 128))
    num_tiles = _cdiv(n, tile_n)
    # TODO(synk): two-pass LSE over a tiled class axis if c * tile_n alone blows VMEM.

    targets_r = targets.astype(jnp.int32).reshape(1, n)       # lane-dense, ~4 B/sample

    f32_tile = c * tile_n * 4
    vmem_need = (2 * c * tile_n * itemsize    # double-buffered preds blocks
                 + 6 * f32_tile               # in-kernel f32 temporaries
                 + 2 * 8 * tile_n * 4         # double-buffered targets blocks (padded)
                 + 8 * tile_n * 4             # per-lane accumulator scratch (padded)
                 + 2 * 8 * 128 * 4)           # output block buffers
    vmem_limit = int(min(max(2 * vmem_need, 8 * 1024 * 1024), 32 * 1024 * 1024))

    kernel = functools.partial(
        _focal_loss_kernel, alpha=float(alpha), gamma=float(gamma),
        n_valid=n, tile_n=tile_n, num_tiles=num_tiles)

    out = pl.pallas_call(
        kernel,
        out_shape=jax.ShapeDtypeStruct((8, 128), jnp.float32),
        grid_spec=pltpu.PrefetchScalarGridSpec(
            num_scalar_prefetch=0,
            grid=(num_tiles,),
            in_specs=[
                pl.BlockSpec((tile_n, c), lambda i: (i, 0)),   # natural (N, C) layout
                pl.BlockSpec((1, tile_n), lambda i: (0, i)),   # lane-dense targets
            ],
            out_specs=pl.BlockSpec((8, 128), lambda i: (0, 0)),
            scratch_shapes=[pltpu.VMEM((1, tile_n), jnp.float32)],
        ),
        compiler_params=pltpu.CompilerParams(
            dimension_semantics=("arbitrary",),
            vmem_limit_bytes=vmem_limit,
        ),
    )(preds, targets_r)

    return out[0, 0] / n


def _focal_loss_ref(preds, targets, *, alpha=0.5, gamma=2.0):
    logp = jax.nn.log_softmax(preds.astype(jnp.float32), axis=-1)
    ce = -jnp.take_along_axis(logp, targets.astype(jnp.int32)[:, None], axis=-1)[:, 0]
    pt = jnp.exp(-ce)
    return jnp.mean(alpha * (1.0 - pt) ** gamma * ce)


if __name__ == "__main__":
    key = jax.random.PRNGKey(0)
    k1, k2 = jax.random.split(key)

    N, C = 300, 16  # small (N, C) logits batch, matching F.cross_entropy(preds, targets)
    preds = jax.random.normal(k1, (N, C), dtype=jnp.float32)
    targets = jax.random.randint(k2, (N,), 0, C, dtype=jnp.int32)

    # Small block size so the test exercises multi-tile accumulation + the ragged tail.
    loss = focal_loss(preds, targets, alpha=0.5, gamma=2.0, max_block_bytes=8 * 1024)
    jax.block_until_ready(loss)

    ref = _focal_loss_ref(preds, targets, alpha=0.5, gamma=2.0)
    assert jnp.allclose(loss, ref, rtol=1e-5, atol=1e-5), (loss, ref)

    print("KERNEL_OK")
</pallas_src>

<mosaic_0001>
module attributes {stable_mosaic.version = 11 : i64} {
  func.func @_focal_loss_kernel(%arg0: i32, %arg1: memref<128x16xf32, #tpu.memory_space<vmem>>, %arg2: memref<1x128xi32, #tpu.memory_space<vmem>>, %arg3: memref<8x128xf32, #tpu.memory_space<vmem>>, %arg4: memref<1x128xf32, #tpu.memory_space<vmem>>) attributes {dimension_semantics = [#tpu.dimension_semantics<arbitrary>], iteration_bounds = array<i64: 3>, scalar_prefetch = 0 : i64, scratch_operands = 1 : i64, tpu.core_type = #tpu.core_type<tc>, window_params = [{transform_indices = @transform_0, window_bounds = array<i64: 128, 16>}, {transform_indices = @transform_1, window_bounds = array<i64: 1, 128>}, {pipeline_mode = #tpu.pipeline_mode<synchronous>, transform_indices = @transform_2, window_bounds = array<i64: 8, 128>}]} {
    %c0_i32 = arith.constant 0 : i32
    %0 = arith.cmpi eq, %arg0, %c0_i32 : i32
    %1 = arith.extui %0 : i1 to i32
    %c0_i32_0 = arith.constant 0 : i32
    %2 = arith.cmpi ne, %1, %c0_i32_0 : i32
    scf.if %2 {
      %cst_15 = arith.constant 0.000000e+00 : f32
      %42 = vector.broadcast %cst_15 : f32 to vector<1x128xf32>
      %c0_16 = arith.constant 0 : index
      %c0_17 = arith.constant 0 : index
      %43 = vector.load %arg4[%c0_16, %c0_17] : memref<1x128xf32, #tpu.memory_space<vmem>>, vector<1x128xf32>
      tpu.vector_store %arg4[%c0_16, %c0_17], %42 {strides = array<i32>} : memref<1x128xf32, #tpu.memory_space<vmem>>, vector<1x128xf32>,
    } else {
    }
    %c0 = arith.constant 0 : index
    %c0_1 = arith.constant 0 : index
    %3 = vector.load %arg1[%c0, %c0_1] : memref<128x16xf32, #tpu.memory_space<vmem>>, vector<128x16xf32>
    %4 = tpu.transpose %3, [1, 0] : vector<128x16xf32> -> vector<16x128xf32>
    %c0_2 = arith.constant 0 : index
    %c0_3 = arith.constant 0 : index
    %5 = vector.load %arg2[%c0_2, %c0_3] : memref<1x128xi32, #tpu.memory_space<vmem>>, vector<1x128xi32>
    %cst = arith.constant dense<0xFF800000> : vector<128xf32>
    %6 = vector.multi_reduction <maximumf>, %4, %cst [0] : vector<16x128xf32> to vector<128xf32>
    %7 = vector.shape_cast %6 : vector<128xf32> to vector<1x128xf32>
    %8 = vector.broadcast %7 : vector<1x128xf32> to vector<16x128xf32>
    %9 = arith.subf %4, %8 : vector<16x128xf32>
    %10 = math.exp %9 : vector<16x128xf32>
    %11 = tpu.iota {dimensions = array<i32: 0>} : vector<16x128xi32>
    %12 = vector.broadcast %5 : vector<1x128xi32> to vector<16x128xi32>
    %13 = arith.cmpi eq, %11, %12 : vector<16x128xi32>
    %cst_4 = arith.constant 0.000000e+00 : f32
    %14 = vector.broadcast %cst_4 : f32 to vector<16x128xf32>
    %15 = arith.select %13, %9, %14 : vector<16x128xi1>, vector<16x128xf32>
    %cst_5 = arith.constant dense<0.000000e+00> : vector<128xf32>
    %16 = vector.multi_reduction <add>, %15, %cst_5 [0] : vector<16x128xf32> to vector<128xf32>
    %17 = vector.shape_cast %16 : vector<128xf32> to vector<1x128xf32>
    %cst_6 = arith.constant 0.000000e+00 : f32
    %18 = vector.broadcast %cst_6 : f32 to vector<16x128xf32>
    %19 = arith.select %13, %18, %10 : vector<16x128xi1>, vector<16x128xf32>
    %cst_7 = arith.constant dense<0.000000e+00> : vector<128xf32>
    %20 = vector.multi_reduction <add>, %19, %cst_7 [0] : vector<16x128xf32> to vector<128xf32>
    %21 = vector.shape_cast %20 : vector<128xf32> to vector<1x128xf32>
    %22 = math.exp %17 : vector<1x128xf32>
    %23 = arith.addf %21, %22 : vector<1x128xf32>
    %24 = math.log %23 : vector<1x128xf32>
    %25 = arith.subf %24, %17 : vector<1x128xf32>
    %26 = arith.divf %21, %23 : vector<1x128xf32>
    %cst_8 = arith.constant 1.000000e+00 : f32
    %27 = vector.broadcast %cst_8 : f32 to vector<1x128xf32>
    %28 = arith.mulf %27, %26 : vector<1x128xf32>
    %29 = arith.mulf %28, %26 : vector<1x128xf32>
    %cst_9 = arith.constant 5.000000e-01 : f32
    %30 = vector.broadcast %cst_9 : f32 to vector<1x128xf32>
    %31 = arith.mulf %30, %29 : vector<1x128xf32>
    %32 = arith.mulf %31, %25 : vector<1x128xf32>
    %c2_i32 = arith.constant 2 : i32
    %33 = arith.cmpi slt, %arg0, %c2_i32 : i32
    %34 = arith.extui %33 : i1 to i32
    %c0_i32_10 = arith.constant 0 : i32
    %35 = arith.cmpi ne, %34, %c0_i32_10 : i32
    scf.if %35 {
      %c0_15 = arith.constant 0 : index
      %c0_16 = arith.constant 0 : index
      %42 = vector.load %arg4[%c0_15, %c0_16] : memref<1x128xf32, #tpu.memory_space<vmem>>, vector<1x128xf32>
      %43 = arith.addf %42, %32 : vector<1x128xf32>
      %c0_17 = arith.constant 0 : index
      %c0_18 = arith.constant 0 : index
      %44 = vector.load %arg4[%c0_17, %c0_18] : memref<1x128xf32, #tpu.memory_space<vmem>>, vector<1x128xf32>
      tpu.vector_store %arg4[%c0_17, %c0_18], %43 {strides = array<i32>} : memref<1x128xf32, #tpu.memory_space<vmem>>, vector<1x128xf32>,
    } else {
    }
    %c2_i32_11 = arith.constant 2 : i32
    %36 = arith.cmpi eq, %arg0, %c2_i32_11 : i32
    %37 = arith.extui %36 : i1 to i32
    %c0_i32_12 = arith.constant 0 : i32
    %38 = arith.cmpi ne, %37, %c0_i32_12 : i32
    scf.if %38 {
      %c128_i32 = arith.constant 128 : i32
      %42 = arith.muli %arg0, %c128_i32 : i32
      %43 = tpu.iota {dimensions = array<i32: 1>} : vector<1x128xi32>
      %44 = vector.broadcast %42 : i32 to vector<1x128xi32>
      %45 = arith.addi %44, %43 : vector<1x128xi32>
      %c0_15 = arith.constant 0 : index
      %c0_16 = arith.constant 0 : index
      %46 = vector.load %arg4[%c0_15, %c0_16] : memref<1x128xf32, #tpu.memory_space<vmem>>, vector<1x128xf32>
      %c300_i32 = arith.constant 300 : i32
      %47 = vector.broadcast %c300_i32 : i32 to vector<1x128xi32>
      %48 = arith.cmpi slt, %45, %47 : vector<1x128xi32>
      %cst_17 = arith.constant 0.000000e+00 : f32
      %49 = vector.broadcast %cst_17 : f32 to vector<1x128xf32>
      %50 = arith.select %48, %32, %49 : vector<1x128xi1>, vector<1x128xf32>
      %51 = arith.addf %46, %50 : vector<1x128xf32>
      %c0_18 = arith.constant 0 : index
      %c0_19 = arith.constant 0 : index
      %52 = vector.load %arg4[%c0_18, %c0_19] : memref<1x128xf32, #tpu.memory_space<vmem>>, vector<1x128xf32>
      tpu.vector_store %arg4[%c0_18, %c0_19], %51 {strides = array<i32>} : memref<1x128xf32, #tpu.memory_space<vmem>>, vector<1x128xf32>,
    } else {
    }
    %c2_i32_13 = arith.constant 2 : i32
    %39 = arith.cmpi eq, %arg0, %c2_i32_13 : i32
    %40 = arith.extui %39 : i1 to i32
    %c0_i32_14 = arith.constant 0 : i32
    %41 = arith.cmpi ne, %40, %c0_i32_14 : i32
    scf.if %41 {
      %c0_15 = arith.constant 0 : index
      %c0_16 = arith.constant 0 : index
      %42 = vector.load %arg4[%c0_15, %c0_16] : memref<1x128xf32, #tpu.memory_space<vmem>>, vector<1x128xf32>
      %43 = vector.shape_cast %42 : vector<1x128xf32> to vector<1x1x128xf32>
      %cst_17 = arith.constant dense<0.000000e+00> : vector<1xf32>
      %44 = vector.multi_reduction <add>, %43, %cst_17 [1, 2] : vector<1x1x128xf32> to vector<1xf32>
      %45 = vector.shape_cast %44 : vector<1xf32> to vector<1x1x1xf32>
      %46 = vector.extract %45[0, 0, 0] : f32 from vector<1x1x1xf32>
      %47 = vector.broadcast %46 : f32 to vector<8x128xf32>
      %c0_18 = arith.constant 0 : index
      %c0_19 = arith.constant 0 : index
      %48 = vector.load %arg3[%c0_18, %c0_19] : memref<8x128xf32, #tpu.memory_space<vmem>>, vector<8x128xf32>
      tpu.vector_store %arg3[%c0_18, %c0_19], %47 {strides = array<i32>} : memref<8x128xf32, #tpu.memory_space<vmem>>, vector<8x128xf32>,
    } else {
    }
    return
  }
  func.func @transform_0(%arg0: i32) -> (i32, i32) {
    %c0_i32 = arith.constant 0 : i32
    %c0_i32_0 = arith.constant 0 : i32
    return %arg0, %c0_i32 : i32, i32
  }
  func.func @transform_1(%arg0: i32) -> (i32, i32) {
    %c0_i32 = arith.constant 0 : i32
    %c0_i32_0 = arith.constant 0 : i32
    return %c0_i32, %arg0 : i32, i32
  }
  func.func @transform_2(%arg0: i32) -> (i32, i32) {
    %c0_i32 = arith.constant 0 : i32
    %c0_i32_0 = arith.constant 0 : i32
    %c0_i32_1 = arith.constant 0 : i32
    return %c0_i32, %c0_i32_0 : i32, i32
  }
}

</mosaic_0001>

<llo_original>
// kernel: tpu_custom_call.1
$region0: #{tpu_custom_call.1}
  #allocation0 [shape = 'u32[]', space=smem, size = 0x4, offset = 0x4, fixed_abs, tag = 'smem constant byte address 0x4 - core index']
  #allocation1 [shape = 'u32[144,128]{1,0:T(1,128)}', space=vmem, size = 0x12000, scoped, tag = 'internal scratch']
  #allocation2 [shape = 'f32[1,128]{1,0:T(1,128)}', space=vmem, size = 0x200, scoped, tag = 'scratch operand']
  %s0 = inlined_call_operand.vmem [shape: f32[300,16], index: 0, kind: input, shape index: {}]
  %s1 = inlined_call_operand.vmem [shape: s32[1,300], index: 1, kind: input, shape index: {}]
  %s2 = inlined_call_operand.hbm [shape: f32[8,128], index: 2, kind: output, shape index: {}]
  %s3 = sld [smem:[#allocation0]]
  $region53: #{tpu_custom_call.1} parent=0
    _
  %s5 = ssub.s32 1, %s3
  %s6 = scalar_select 0, %s5, %s3
  $region1: #{tpu_custom_call.1} parent=0
    #allocation3 [shape = 'u8[4096]{0}', space=vmem, size = 0x1000, scoped, tag = 'output window, operand 0, single buffered']
    #allocation4 [shape = 's32[2]{0}', space=sflag, size = 0x8, scoped, tag = 'scoped memory for tpu_custom_call.1']
    %7 = vsyncpa [#allocation4], 0
    loop: start=0, step=1, limit=5
    $region2: #{tpu_custom_call.1} parent=1 // loop_pre_header
      _
    $region3: #{tpu_custom_call.1} parent=1 // loop_header
      %s9 = sphi 0, %s13
      %p10 = scmp.ge.s32.totalorder %s9, 5
      %s19 = sphi 0, %s21
      %s22 = sphi 0, %s19
      %s23 = sphi 0, %s22
      %s39 = sphi 0, %s23
      %s45 = sphi 0, %s47
      %s48 = sphi 0, %s45
      %s49 = sphi 0, %s48
      %s65 = sphi 0, %s49
      %s69 = sphi 0, %s69
      %s71 = sphi 0, %s69
      %s72 = sphi 0, %s71
      %s86 = sphi 0, %s72
    $region4: #{tpu_custom_call.1} parent=1 // loop_header_branch
      %12 = sbr.rel (%p10) target = $region8
    $region5: #{tpu_custom_call.1} parent=1 // loop_body
      %s14 = ssub.s32 %s9, 1
      %s15 = ssub.s32 %s9, 2
      %s16 = sadd.s32 %s9, 1
      %s17 = ssub.s32 %s9, %s16
      %p18 = scmp.eq.s32.totalorder %s17, 0
      %s20 = sadd.s32 %s19, 1
      %s21 = scalar_select %p18, %s19, %s20
      %p24 = pneg %p18
      %p25 = scmp.eq.s32.totalorder %s9, 2
      %p26 = por %p24, %p25
      %p27 = scmp.ne.s32.totalorder %s19, %s22
      %p28 = scmp.eq.s32.totalorder %s9, 0
      %p29 = por %p27, %p28
      %p30 = scmp.ne.s32.totalorder %s19, %s22
      %p31 = scmp.eq.s32.totalorder %s14, 2
      %p32 = por %p30, %p31
      %p33 = scmp.ne.s32.totalorder %s22, %s23
      %p34 = scmp.eq.s32.totalorder %s14, 0
      %p35 = por %p33, %p34
      %p36 = scmp.ne.s32.totalorder %s22, %s23
      %p37 = scmp.eq.s32.totalorder %s15, 2
      %p38 = por %p36, %p37
      %p40 = scmp.ne.s32.totalorder %s23, %s39
      %p41 = scmp.eq.s32.totalorder %s15, 0
      %p42 = por %p40, %p41
      %s43 = ssub.s32 %s9, %s16
      %p44 = scmp.eq.s32.totalorder %s43, 0
      %s46 = sadd.s32 %s45, 1
      %s47 = scalar_select %p44, %s45, %s46
      %p50 = pneg %p44
      %p51 = scmp.eq.s32.totalorder %s9, 2
      %p52 = por %p50, %p51
      %p53 = scmp.ne.s32.totalorder %s45, %s48
      %p54 = scmp.eq.s32.totalorder %s9, 0
      %p55 = por %p53, %p54
      %p56 = scmp.ne.s32.totalorder %s45, %s48
      %p57 = scmp.eq.s32.totalorder %s14, 2
      %p58 = por %p56, %p57
      %p59 = scmp.ne.s32.totalorder %s48, %s49
      %p60 = scmp.eq.s32.totalorder %s14, 0
      %p61 = por %p59, %p60
      %p62 = scmp.ne.s32.totalorder %s48, %s49
      %p63 = scmp.eq.s32.totalorder %s15, 2
      %p64 = por %p62, %p63
      %p66 = scmp.ne.s32.totalorder %s49, %s65
      %p67 = scmp.eq.s32.totalorder %s15, 0
      %p68 = por %p66, %p67
      %s70 = sadd.s32 %s69, 1
      %p73 = scmp.eq.s32.totalorder %s9, 2
      %p74 = scmp.ne.s32.totalorder %s69, %s71
      %p75 = scmp.eq.s32.totalorder %s9, 0
      %p76 = por %p74, %p75
      %p77 = scmp.ne.s32.totalorder %s69, %s71
      %p78 = scmp.eq.s32.totalorder %s14, 2
      %p79 = por %p77, %p78
      %p80 = scmp.ne.s32.totalorder %s71, %s72
      %p81 = scmp.eq.s32.totalorder %s14, 0
      %p82 = por %p80, %p81
      %p83 = scmp.ne.s32.totalorder %s71, %s72
      %p84 = scmp.eq.s32.totalorder %s15, 2
      %p85 = por %p83, %p84
      %p87 = scmp.ne.s32.totalorder %s72, %s86
      %p88 = scmp.eq.s32.totalorder %s15, 0
      %p89 = por %p87, %p88
      %p90 = scmp.le.s32.totalorder 1, %s9
      %p91 = scmp.lt.s32.totalorder %s9, 4
      %p92 = pnand %p90, %p91
      %p93 = pneg %p92
      // Predicated region
      $region9: #{tpu_custom_call.1} parent=5 // pred_check
        _
      $region10: #{tpu_custom_call.1} parent=5 // pred_check_branch
        %95 = sbr.rel (%p92) target = $region12
      $region11: #{tpu_custom_call.1} parent=5 // pred_region
        %s96 = ssub.s32 %s9, 1
      $region12: #{tpu_custom_call.1} parent=5 // pred_fallthru
        _
      %p97 = scmp.lt.s32.totalorder %s9, 3
      // Predicated region
      $region13: #{tpu_custom_call.1} parent=5 // pred_check
        %p98 = pneg %p97
      $region14: #{tpu_custom_call.1} parent=5 // pred_check_branch
        %100 = sbr.rel (%p98) target = $region16
      $region15: #{tpu_custom_call.1} parent=5 // pred_region
        // Predicated region
        $region17: #{tpu_custom_call.1} parent=15 // pred_check
          %p101 = pneg %p29
        $region18: #{tpu_custom_call.1} parent=15 // pred_check_branch
          %103 = sbr.rel (%p101) target = $region20
        $region19: #{tpu_custom_call.1} parent=15 // pred_region
          %s104 = smul.u32 16, %s9
          %s105 = ssub.s32 38, %s104
          %p106 = scmp.lt.s32.totalorder %s105, 16
          %s107 = scalar_select %p106, %s105, 16
          %s108 = smul.u32 128, %s107
          %p109 = scmp.lt.s32.totalorder %s104, 37
          %s110 = scalar_select %p109, %s104, 37
          %s111 = smul.addr %s110, 8
          %s112 = scalar_lea.vmem %s0, %s111
          %s113 = smul.u32 16, %s9
          %s114 = ssub.s32 38, %s113
          %p115 = scmp.lt.s32.totalorder %s114, 16
          %s116 = scalar_select %p115, %s114, 16
          %s117 = smul.u32 128, %s116
        $region20: #{tpu_custom_call.1} parent=15 // pred_fallthru
          _
        // Predicated region
        $region21: #{tpu_custom_call.1} parent=15 // pred_check
          %p118 = pneg %p55
        $region22: #{tpu_custom_call.1} parent=15 // pred_check_branch
          %120 = sbr.rel (%p118) target = $region24
        $region23: #{tpu_custom_call.1} parent=15 // pred_region
          %p121 = scmp.lt.s32.totalorder %s9, 2
          %s122 = scalar_select %p121, %s9, 2
          %s123 = scalar_lea.vmem %s1, %s122
        $region24: #{tpu_custom_call.1} parent=15 // pred_fallthru
          _
      $region16: #{tpu_custom_call.1} parent=5 // pred_fallthru
        _
      %p124 = scmp.le.s32.totalorder 1, %s9
      %p125 = scmp.lt.s32.totalorder %s9, 4
      %p126 = pnand %p124, %p125
      %p127 = pneg %p126
      // Predicated region
      $region25: #{tpu_custom_call.1} parent=5 // pred_check
        _
      $region26: #{tpu_custom_call.1} parent=5 // pred_check_branch
        %129 = sbr.rel (%p126) target = $region28
      $region27: #{tpu_custom_call.1} parent=5 // pred_region
        %s130 = ssub.s32 %s9, 1
        %s131 = smul.u32 16, %s14
        %s132 = ssub.s32 38, %s131
        %p133 = scmp.lt.s32.totalorder %s132, 16
        %s134 = scalar_select %p133, %s132, 16
        %s135 = smul.u32 128, %s134
        %p136 = scmp.lt.s32.totalorder %s131, 37
        %s137 = scalar_select %p136, %s131, 37
        %s138 = smul.addr %s137, 8
        %s139 = scalar_lea.vmem %s0, %s138
        %p140 = pneg %p35
        %p141 = pneg %p32
        %p142 = scmp.lt.s32.totalorder %s14, 2
        %s143 = scalar_select %p142, %s14, 2
        %s144 = scalar_lea.vmem %s1, %s143
        %p145 = pneg %p61
        %p146 = pneg %p58
        %p147 = pneg %p82
        %p148 = pneg %p79
        %s149 = smul.u32 16, %s14
        %s150 = ssub.s32 38, %s149
        %p151 = scmp.lt.s32.totalorder %s150, 16
        %s152 = scalar_select %p151, %s150, 16
        %s153 = smul.u32 128, %s152
        %p154 = scmp.lt.s32.totalorder %s149, 37
        %s155 = scalar_select %p154, %s149, 37
        %s156 = smul.addr %s155, 8
        %s157 = scalar_lea.vmem %s0, %s156
        %s158 = smul.u32 16, %s14
        %s159 = ssub.s32 38, %s158
        %p160 = scmp.lt.s32.totalorder %s159, 16
        %s161 = scalar_select %p160, %s159, 16
        %s162 = smul.u32 128, %s161
        %p163 = scmp.lt.s32.totalorder %s14, 2
        %s164 = scalar_select %p163, %s14, 2
        %s165 = scalar_lea.vmem %s1, %s164
        %p166 = scmp.eq.s32.totalorder %s14, 0
        // Predicated region
        $region29: #{tpu_custom_call.1} parent=27 // pred_check
          %p167 = pneg %p166
        $region30: #{tpu_custom_call.1} parent=27 // pred_check_branch
          %169 = sbr.rel (%p167) target = $region32
        $region31: #{tpu_custom_call.1} parent=27 // pred_region
          %170 = vst [vmem:[#allocation2] sm:$0x1] 0.0
        $region32: #{tpu_custom_call.1} parent=27 // pred_fallthru
          _
        %v171 = vld [vmem:[%s157] sm:$0xff]
        %v172 = vld [vmem:[%s157 + $0x8] sm:$0xff]
        %v173 = vld [vmem:[%s157 + $0x10] sm:$0xff]
        %v174 = vld [vmem:[%s157 + $0x18] sm:$0xff]
        %v175 = vld [vmem:[%s157 + $0x20] sm:$0xff]
        %v176 = vld [vmem:[%s157 + $0x28] sm:$0xff]
        %v177 = vld [vmem:[%s157 + $0x30] sm:$0xff]
        %v178 = vld [vmem:[%s157 + $0x38] sm:$0xff]
        %v179 = vld [vmem:[%s157 + $0x40] sm:$0xff]
        %v180 = vld [vmem:[%s157 + $0x48] sm:$0xff]
        %v181 = vld [vmem:[%s157 + $0x50] sm:$0xff]
        %v182 = vld [vmem:[%s157 + $0x58] sm:$0xff]
        %v183 = vld [vmem:[%s157 + $0x60] sm:$0xff]
        %v184 = vld [vmem:[%s157 + $0x68] sm:$0xff]
        %v185 = vld [vmem:[%s157 + $0x70] sm:$0xff]
        %v186 = vld [vmem:[%s157 + $0x78] sm:$0xff]
        %187 = vxpose.xlu0.b32.start [1/16] %v171, 128
        %188 = vxpose.xlu0.b32.cont [2/16] %v172, 128
        %189 = vxpose.xlu0.b32.cont [3/16] %v173, 128
        %190 = vxpose.xlu0.b32.cont [4/16] %v174, 128
        %191 = vxpose.xlu0.b32.cont [5/16] %v175, 128
        %192 = vxpose.xlu0.b32.cont [6/16] %v176, 128
        %193 = vxpose.xlu0.b32.cont [7/16] %v177, 128
        %194 = vxpose.xlu0.b32.cont [8/16] %v178, 128
        %195 = vxpose.xlu0.b32.cont [9/16] %v179, 128
        %196 = vxpose.xlu0.b32.cont [10/16] %v180, 128
        %197 = vxpose.xlu0.b32.cont [11/16] %v181, 128
        %198 = vxpose.xlu0.b32.cont [12/16] %v182, 128
        %199 = vxpose.xlu0.b32.cont [13/16] %v183, 128
        %200 = vxpose.xlu0.b32.cont [14/16] %v184, 128
        %201 = vxpose.xlu0.b32.cont [15/16] %v185, 128
        %202 = vxpose.xlu0.b32.end [16/16] %v186, 128
        %v203 = vpop.trf.xlu0
        %v204 = vpop.trf.xlu0
        %v205 = vpop.trf.xlu0
        %v206 = vpop.trf.xlu0
        %v207 = vpop.trf.xlu0
        %v208 = vpop.trf.xlu0
        %v209 = vpop.trf.xlu0
        %v210 = vpop.trf.xlu0
        %v211 = vpop.trf.xlu0
        %v212 = vpop.trf.xlu0
        %v213 = vpop.trf.xlu0
        %v214 = vpop.trf.xlu0
        %v215 = vpop.trf.xlu0
        %v216 = vpop.trf.xlu0
        %v217 = vpop.trf.xlu0
        %v218 = vpop.trf.xlu0
        %v219 = vld [vmem:[%s165] sm:$0x1]
        %v220 = vmax.f32 %v203, %v204
        %v221 = vrot.slane %v220, 4
        %v222 = vmax.f32 %v220, %v221
        %v223 = vrot.slane %v222, 2
        %v224 = vmax.f32 %v222, %v223
        %v225 = vrot.slane %v224, 1
        %v226 = vmax.f32 %v224, %v225
        %v227 = vsub.f32 %v203, %v226
        %v228 = vsub.f32 %v204, %v226
        %v229 = vmul.f32 %v227, 1.442695
        %v230 = vpow.pop %v229
        %v231 = vmul.f32 %v228, 1.442695
        %v232 = vpow.pop %v231
        %v233 = vlaneseq
        %v234 = vshrl.u32 %v233, 7
        %v235 = vadd.s32 %v234, 8
        %v236 = vlaneseq
        %v237 = vshrl.u32 %v236, 7
        %v238 = vsub.s32 0, %v237
        %v239 = vrot.slane %v219, %v238
        %vm240 = vcmp.eq.s32.totalorder %v234, %v239
        %vm241 = vcmp.eq.s32.totalorder %v235, %v239
        %v242 = vsel %vm240, %v227, 0.0
        %v243 = vsel %vm241, %v228, 0.0
        %v244 = vadd.f32 %v242, %v243
        %v245 = vrot.slane %v244, 4
        %v246 = vadd.f32 %v244, %v245
        %v247 = vrot.slane %v246, 2
        %v248 = vadd.f32 %v246, %v247
        %v249 = vrot.slane %v248, 1
        %v250 = vadd.f32 %v248, %v249
        %v251 = vsel %vm240, 0.0, %v230
        %v252 = vsel %vm241, 0.0, %v232
        %v253 = vadd.f32 %v251, %v252
        %v254 = vrot.slane %v253, 4
        %v255 = vadd.f32 %v253, %v254
        %v256 = vrot.slane %v255, 2
        %v257 = vadd.f32 %v255, %v256
        %v258 = vrot.slane %v257, 1
        %v259 = vadd.f32 %v257, %v258
        %v260 = vmul.f32 %v250, 1.442695
        %v261 = vpow.pop %v260
        %v262 = vadd.f32 %v259, %v261
        %v263 = vlog2.pop %v262
        %v264 = vmul.f32 %v263, 0.6931472
        %v265 = vsub.f32 %v264, %v250
        %v266 = vrcp.pop %v262
        %v267 = vmul.f32 %v259, %v266
        %v268 = vmul.f32 %v267, %v267
        %v269 = vmul.f32 %v268, 0.5
        %v270 = vmul.f32 %v269, %v265
        %p271 = scmp.lt.s32.totalorder %s14, 2
        // Predicated region
        $region33: #{tpu_custom_call.1} parent=27 // pred_check
          %p272 = pneg %p271
        $region34: #{tpu_custom_call.1} parent=27 // pred_check_branch
          %274 = sbr.rel (%p272) target = $region36
        $region35: #{tpu_custom_call.1} parent=27 // pred_region
          %v275 = vld [vmem:[#allocation2] sm:$0x1]
          %v276 = vadd.f32 %v275, %v270
          %277 = vst [vmem:[#allocation2] sm:$0x1] %v276
        $region36: #{tpu_custom_call.1} parent=27 // pred_fallthru
          _
        %p278 = scmp.eq.s32.totalorder %s14, 2
        // Predicated region
        $region37: #{tpu_custom_call.1} parent=27 // pred_check
          %p279 = pneg %p278
        $region38: #{tpu_custom_call.1} parent=27 // pred_check_branch
          %281 = sbr.rel (%p279) target = $region40
        $region39: #{tpu_custom_call.1} parent=27 // pred_region
          %s282 = smul.u32 %s14, 128
          %v283 = vlaneseq
          %v284 = vand.u32 %v283, 127
          %v285 = vstv %s282
          %v286 = vadd.s32 %v285, %v284
          %v287 = vld [vmem:[#allocation2] sm:$0x1]
          %vm288 = vcmp.lt.s32.totalorder %v286, 300
          %v289 = vsel %vm288, %v270, 0.0
          %v290 = vadd.f32 %v287, %v289
          %291 = vst [vmem:[#allocation2] sm:$0x1] %v290
          %v292 = vld [vmem:[#allocation2] sm:$0x1]
          %vm293 = vcmask 1040384
          %v294 = vsel %vm293, %v292, 0.0
          %295 = vadd.xlane.f32.xlu0 %v294
          %v296 = vpop.xlane.xlu0 %295
          %v297 = vrot.slane %v296, 4
          %v298 = vadd.f32 %v296, %v297
          %v299 = vrot.slane %v298, 2
          %v300 = vadd.f32 %v298, %v299
          %v301 = vrot.slane %v300, 1
          %v302 = vadd.f32 %v300, %v301
          %s303 = vtos %v302
          %v304 = vstv %s303
          %305 = vst [vmem:[#allocation3] sm:$0xff] %v304
        $region40: #{tpu_custom_call.1} parent=27 // pred_fallthru
          _
        // Predicated region
        $region41: #{tpu_custom_call.1} parent=27 // pred_check
          %p306 = pneg %p79
        $region42: #{tpu_custom_call.1} parent=27 // pred_check_branch
          %308 = sbr.rel (%p306) target = $region44
        $region43: #{tpu_custom_call.1} parent=27 // pred_region
          %s310 = ssub.s32 128, 128
          %311 = vsyncadd [#allocation4], %s310
          %s313 = sshll.u32 [#allocation3], 4
          %s314 = int_to_ptr.vmem [resolvable:$true] %s313
          %316 = dma.vmem_to_hbm [thread:$0]  %s314, 128, %s2, [#allocation4]
        $region44: #{tpu_custom_call.1} parent=27 // pred_fallthru
          _
        // Predicated region
        $region45: #{tpu_custom_call.1} parent=27 // pred_check
          %p317 = pneg %p79
        $region46: #{tpu_custom_call.1} parent=27 // pred_check_branch
          %319 = sbr.rel (%p317) target = $region48
        $region47: #{tpu_custom_call.1} parent=27 // pred_region
          %320 = dma.done [#allocation4], 128
        $region48: #{tpu_custom_call.1} parent=27 // pred_fallthru
          _
      $region28: #{tpu_custom_call.1} parent=5 // pred_fallthru
        _
      %p321 = scmp.le.s32.totalorder 2, %s9
      // Predicated region
      $region49: #{tpu_custom_call.1} parent=5 // pred_check
        %p322 = pneg %p321
      $region50: #{tpu_custom_call.1} parent=5 // pred_check_branch
        %324 = sbr.rel (%p322) target = $region52
      $region51: #{tpu_custom_call.1} parent=5 // pred_region
        %s325 = ssub.s32 %s9, 2
      $region52: #{tpu_custom_call.1} parent=5 // pred_fallthru
        _
    $region6: #{tpu_custom_call.1} parent=1 // loop_footer
      %s13 = sadd.s32 1, %s9
    $region7: #{tpu_custom_call.1} parent=1 // loop_footer_branch
      %8 = sbr.rel target = $region3
    $region8: #{tpu_custom_call.1} parent=1 // loop_exit
      _
    %326 = vsyncpa [#allocation4], 1
    %s327 = scalar_lea.sflag [#allocation4], 1
    %328 = vsyncpa %s327, 1

</llo_original>
